<compile_context>
chip_gen: v6e
topology: v6e:2x2x1
jax: 0.10.0
libtpu: 0.0.40
codegen_flags: <defaults>
</compile_context>

<pallas_src>
import functools

import jax
import jax.numpy as jnp
from jax.experimental import pallas as pl
from jax.experimental.pallas import tpu as pltpu


def _round_up(n, m):
    return ((n + m - 1) // m) * m


def policy_kernel(x_ref, w1_ref, b1_ref, wv_ref, bv_ref,
                  w2_ref, b2_ref, w3_ref, b3_ref,
                  out_ref, *, action_dim):
    """Fused actor-critic forward for one batch tile (all operands in VMEM).

    Writes one lane-dense (tile, out_lanes) slab:
      lanes [0, action_dim)  -> softmax action probabilities
      lane   action_dim      -> state value
      lanes > action_dim     -> 0
    """
    # affine1 + relu (state_dim -> 128): bf16 MXU, f32 accumulation.
    x = x_ref[...].astype(jnp.bfloat16)
    h1 = jnp.dot(x, w1_ref[...], preferred_element_type=jnp.float32) + b1_ref[...]
    h1 = jnp.maximum(h1, 0.0)

    # value_head (128 -> 1): broadcast-multiply + lane reduction (VPU/XLU), all f32.
    # Avoids an N=1 MXU matmul that would waste 127/128 output lanes.
    v = jnp.sum(h1 * wv_ref[...], axis=-1, keepdims=True) + bv_ref[...]

    # action1 + relu (128 -> 256): the dominant matmul, bf16 MXU.
    h2 = jnp.dot(h1.astype(jnp.bfloat16), w2_ref[...],
                 preferred_element_type=jnp.float32) + b2_ref[...]
    h2 = jnp.maximum(h2, 0.0)

    # action2 (256 -> out_lanes; lanes >= action_dim carry a -1e30 bias) + stable softmax.
    logits = jnp.dot(h2.astype(jnp.bfloat16), w3_ref[...],
                     preferred_element_type=jnp.float32) + b3_ref[...]
    logits = logits - jnp.max(logits, axis=-1, keepdims=True)
    e = jnp.exp(logits)                       # padding lanes underflow to exactly 0
    inv = pl.reciprocal(jnp.sum(e, axis=-1, keepdims=True), approx=True)  # EUP slot
    probs = e * inv

    # Pack the value into lane `action_dim`; store one unmasked, lane-dense slab.
    lane = jax.lax.broadcasted_iota(jnp.int32, probs.shape, 1)
    out_ref[...] = jnp.where(lane == action_dim, v, probs).astype(out_ref.dtype)


def policy_forward(x, params, *, tile_b=2048):
    """x: (B, state_dim) f32. Returns (action_prob (B, A), state_values (B, 1))."""
    x = jnp.asarray(x, jnp.float32)
    B, state_dim = x.shape
    w1, b1 = params["w1"], params["b1"]
    wv, bv = params["wv"], params["bv"]
    w2, b2 = params["w2"], params["b2"]
    w3, b3 = params["w3"], params["b3"]
    action_dim = w3.shape[1]

    # Lane-dense packed output: probs in lanes [0, A), value in lane A, zeros above.
    out_lanes = max(128, _round_up(action_dim + 1, 128))

    # bf16 weights for the MXU (cast once per call, outside the grid loop); biases stay f32.
    bf = jnp.bfloat16
    w1b = w1.astype(bf)
    w2b = w2.astype(bf)
    w3p = jnp.pad(w3.astype(bf), ((0, 0), (0, out_lanes - action_dim)))
    b3p = jnp.pad(b3, ((0, 0), (0, out_lanes - action_dim)), constant_values=-1e30)

    # Batch tile: multiple of 8 sublanes, capped at tile_b, and chosen so the grid has
    # >= 2 steps whenever B allows it (DMA/compute overlap + both v7x TCs).
    # No wrapper-side jnp.pad: the ragged last block's OOB output rows are masked.
    tile = min(_round_up(tile_b, 8), max(8, _round_up(pl.cdiv(B, 2), 8)))
    grid = (pl.cdiv(B, tile),)

    resident = lambda shape: pl.BlockSpec(shape, lambda i: (0, 0))  # stays in VMEM

    flops = 2 * B * (state_dim * 128 + 128 * 256 + 256 * out_lanes + 128)
    bytes_accessed = (x.size * 4 + B * out_lanes * 4
                      + (w1b.size + w2b.size + w3p.size) * 2
                      + (b1.size + b2.size + b3p.size + wv.size + bv.size) * 4)

    packed = pl.pallas_call(
        functools.partial(policy_kernel, action_dim=action_dim),
        out_shape=jax.ShapeDtypeStruct((B, out_lanes), jnp.float32),
        grid=grid,
        in_specs=[
            pl.BlockSpec((tile, state_dim), lambda i: (i, 0)),
            resident(w1b.shape), resident(b1.shape),
            resident(wv.shape), resident(bv.shape),
            resident(w2b.shape), resident(b2.shape),
            resident(w3p.shape), resident(b3p.shape),
        ],
        out_specs=pl.BlockSpec((tile, out_lanes), lambda i: (i, 0)),
        compiler_params=pltpu.CompilerParams(
            dimension_semantics=("parallel",),        # shard batch tiles across TCs (v7x)
            vmem_limit_bytes=48 * 1024 * 1024,        # headroom for tile_b=2048 on v5e too
        ),
        cost_estimate=pl.CostEstimate(
            flops=int(flops),
            transcendentals=int(B * out_lanes),
            bytes_accessed=int(bytes_accessed),
        ),
    )(x, w1b, b1, wv, bv, w2b, b2, w3p, b3p)

    action_prob = packed[:, :action_dim]
    state_values = packed[:, action_dim:action_dim + 1]
    return action_prob, state_values


def init_params(key, state_dim, action_dim):
    """Deterministic init (PyTorch-Linear-style uniform); weights stored as (in, out)."""
    k1, kv, k2, k3, kb = jax.random.split(key, 5)

    def uniform(k, shape, fan_in):
        bound = 1.0 / float(fan_in) ** 0.5
        return jax.random.uniform(k, shape, jnp.float32, -bound, bound)

    b1, bv, b2, b3 = jax.random.split(kb, 4)
    return {
        "w1": uniform(k1, (state_dim, 128), state_dim),
        "b1": uniform(b1, (1, 128), state_dim),
        "wv": uniform(kv, (1, 128), 128),        # value_head weight stored as a row (1, 128)
        "bv": uniform(bv, (1, 1), 128),
        "w2": uniform(k2, (128, 256), 128),
        "b2": uniform(b2, (1, 256), 128),
        "w3": uniform(k3, (256, action_dim), 256),
        "b3": uniform(b3, (1, action_dim), 256),
    }


# TODO(synk): choose_action (Categorical sampling) and learn() (returns/Adam update) are
# host-side RL bookkeeping, not part of the forward pass, and are not implemented here.

if __name__ == "__main__":
    key = jax.random.PRNGKey(0)
    k_x, k_p = jax.random.split(key)

    batch, state_dim, action_dim = 8, 8, 4
    x = jax.random.normal(k_x, (batch, state_dim), jnp.float32)
    params = init_params(k_p, state_dim, action_dim)

    probs, values = policy_forward(x, params)
    jax.block_until_ready((probs, values))

    # Matched-precision reference of Policy.forward (bf16 MXU operands, f32 accumulation).
    def ref(x, p):
        bf = jnp.bfloat16
        h1 = jnp.maximum(
            jnp.dot(x.astype(bf), p["w1"].astype(bf),
                    preferred_element_type=jnp.float32) + p["b1"], 0.0)
        v = jnp.sum(h1 * p["wv"], axis=-1, keepdims=True) + p["bv"]
        h2 = jnp.maximum(
            jnp.dot(h1.astype(bf), p["w2"].astype(bf),
                    preferred_element_type=jnp.float32) + p["b2"], 0.0)
        logits = jnp.dot(h2.astype(bf), p["w3"].astype(bf),
                         preferred_element_type=jnp.float32) + p["b3"]
        return jax.nn.softmax(logits, axis=-1), v

    ref_probs, ref_values = ref(x, params)
    assert probs.shape == (batch, action_dim)
    assert values.shape == (batch, 1)
    # approx reciprocal + bf16 MXU -> tolerances looser than an exact-f32 check.
    assert jnp.allclose(jnp.sum(probs, axis=-1), 1.0, atol=5e-3)
    assert jnp.allclose(probs, ref_probs, atol=2e-3, rtol=2e-3)
    assert jnp.allclose(values, ref_values, atol=1e-3, rtol=1e-3)

    print("KERNEL_OK")
</pallas_src>

<mosaic_0001>
module attributes {stable_mosaic.version = 11 : i64} {
  func.func @policy_kernel(%arg0: i32, %arg1: memref<8x8xf32, #tpu.memory_space<vmem>>, %arg2: memref<8x128xbf16, #tpu.memory_space<vmem>>, %arg3: memref<1x128xf32, #tpu.memory_space<vmem>>, %arg4: memref<1x128xf32, #tpu.memory_space<vmem>>, %arg5: memref<1x1xf32, #tpu.memory_space<vmem>>, %arg6: memref<128x256xbf16, #tpu.memory_space<vmem>>, %arg7: memref<1x256xf32, #tpu.memory_space<vmem>>, %arg8: memref<256x128xbf16, #tpu.memory_space<vmem>>, %arg9: memref<1x128xf32, #tpu.memory_space<vmem>>, %arg10: memref<8x128xf32, #tpu.memory_space<vmem>>) attributes {dimension_semantics = [#tpu.dimension_semantics<parallel>], iteration_bounds = array<i64: 1>, scalar_prefetch = 0 : i64, scratch_operands = 0 : i64, tpu.core_type = #tpu.core_type<tc>, window_params = [{transform_indices = @transform_0, window_bounds = array<i64: 8, 8>}, {pipeline_mode = #tpu.pipeline_mode<synchronous>, transform_indices = @transform_1, window_bounds = array<i64: 8, 128>}, {pipeline_mode = #tpu.pipeline_mode<synchronous>, transform_indices = @transform_2, window_bounds = array<i64: 1, 128>}, {pipeline_mode = #tpu.pipeline_mode<synchronous>, transform_indices = @transform_3, window_bounds = array<i64: 1, 128>}, {pipeline_mode = #tpu.pipeline_mode<synchronous>, transform_indices = @transform_4, window_bounds = array<i64: 1, 1>}, {pipeline_mode = #tpu.pipeline_mode<synchronous>, transform_indices = @transform_5, window_bounds = array<i64: 128, 256>}, {pipeline_mode = #tpu.pipeline_mode<synchronous>, transform_indices = @transform_6, window_bounds = array<i64: 1, 256>}, {pipeline_mode = #tpu.pipeline_mode<synchronous>, transform_indices = @transform_7, window_bounds = array<i64: 256, 128>}, {pipeline_mode = #tpu.pipeline_mode<synchronous>, transform_indices = @transform_8, window_bounds = array<i64: 1, 128>}, {transform_indices = @transform_9, window_bounds = array<i64: 8, 128>}]} {
    %c0 = arith.constant 0 : index
    %c0_0 = arith.constant 0 : index
    %0 = vector.load %arg1[%c0, %c0_0] : memref<8x8xf32, #tpu.memory_space<vmem>>, vector<8x8xf32>
    %1 = arith.truncf %0 : vector<8x8xf32> to vector<8x8xbf16>
    %c0_1 = arith.constant 0 : index
    %c0_2 = arith.constant 0 : index
    %2 = vector.load %arg2[%c0_1, %c0_2] : memref<8x128xbf16, #tpu.memory_space<vmem>>, vector<8x128xbf16>
    %cst = arith.constant dense<0.000000e+00> : vector<8x128xf32>
    %3 = tpu.matmul %1, %2, %cst {dimension_numbers = #tpu.dot_dimension_numbers<[1], [0], [0], [1], [0, 0, 1, 1], [], []>} : vector<8x8xbf16>, vector<8x128xbf16>, vector<8x128xf32> -> vector<8x128xf32>
    %c0_3 = arith.constant 0 : index
    %c0_4 = arith.constant 0 : index
    %4 = vector.load %arg3[%c0_3, %c0_4] : memref<1x128xf32, #tpu.memory_space<vmem>>, vector<1x128xf32>
    %5 = vector.broadcast %4 : vector<1x128xf32> to vector<8x128xf32>
    %6 = arith.addf %3, %5 : vector<8x128xf32>
    %cst_5 = arith.constant 0.000000e+00 : f32
    %7 = vector.broadcast %cst_5 : f32 to vector<8x128xf32>
    %8 = arith.maximumf %6, %7 : vector<8x128xf32>
    %c0_6 = arith.constant 0 : index
    %c0_7 = arith.constant 0 : index
    %9 = vector.load %arg4[%c0_6, %c0_7] : memref<1x128xf32, #tpu.memory_space<vmem>>, vector<1x128xf32>
    %10 = vector.broadcast %9 : vector<1x128xf32> to vector<8x128xf32>
    %11 = arith.mulf %8, %10 : vector<8x128xf32>
    %cst_8 = arith.constant dense<0.000000e+00> : vector<8xf32>
    %12 = vector.multi_reduction <add>, %11, %cst_8 [1] : vector<8x128xf32> to vector<8xf32>
    %13 = vector.shape_cast %12 : vector<8xf32> to vector<8x1xf32>
    %c0_9 = arith.constant 0 : index
    %c0_10 = arith.constant 0 : index
    %14 = vector.load %arg5[%c0_9, %c0_10] : memref<1x1xf32, #tpu.memory_space<vmem>>, vector<1x1xf32>
    %15 = vector.broadcast %14 : vector<1x1xf32> to vector<8x1xf32>
    %16 = arith.addf %13, %15 : vector<8x1xf32>
    %17 = arith.truncf %8 : vector<8x128xf32> to vector<8x128xbf16>
    %c0_11 = arith.constant 0 : index
    %c0_12 = arith.constant 0 : index
    %18 = vector.load %arg6[%c0_11, %c0_12] : memref<128x256xbf16, #tpu.memory_space<vmem>>, vector<128x256xbf16>
    %cst_13 = arith.constant dense<0.000000e+00> : vector<8x256xf32>
    %19 = tpu.matmul %17, %18, %cst_13 {dimension_numbers = #tpu.dot_dimension_numbers<[1], [0], [0], [1], [0, 0, 1, 1], [], []>} : vector<8x128xbf16>, vector<128x256xbf16>, vector<8x256xf32> -> vector<8x256xf32>
    %c0_14 = arith.constant 0 : index
    %c0_15 = arith.constant 0 : index
    %20 = vector.load %arg7[%c0_14, %c0_15] : memref<1x256xf32, #tpu.memory_space<vmem>>, vector<1x256xf32>
    %21 = vector.broadcast %20 : vector<1x256xf32> to vector<8x256xf32>
    %22 = arith.addf %19, %21 : vector<8x256xf32>
    %cst_16 = arith.constant 0.000000e+00 : f32
    %23 = vector.broadcast %cst_16 : f32 to vector<8x256xf32>
    %24 = arith.maximumf %22, %23 : vector<8x256xf32>
    %25 = arith.truncf %24 : vector<8x256xf32> to vector<8x256xbf16>
    %c0_17 = arith.constant 0 : index
    %c0_18 = arith.constant 0 : index
    %26 = vector.load %arg8[%c0_17, %c0_18] : memref<256x128xbf16, #tpu.memory_space<vmem>>, vector<256x128xbf16>
    %cst_19 = arith.constant dense<0.000000e+00> : vector<8x128xf32>
    %27 = tpu.matmul %25, %26, %cst_19 {dimension_numbers = #tpu.dot_dimension_numbers<[1], [0], [0], [1], [0, 0, 1, 1], [], []>} : vector<8x256xbf16>, vector<256x128xbf16>, vector<8x128xf32> -> vector<8x128xf32>
    %c0_20 = arith.constant 0 : index
    %c0_21 = arith.constant 0 : index
    %28 = vector.load %arg9[%c0_20, %c0_21] : memref<1x128xf32, #tpu.memory_space<vmem>>, vector<1x128xf32>
    %29 = vector.broadcast %28 : vector<1x128xf32> to vector<8x128xf32>
    %30 = arith.addf %27, %29 : vector<8x128xf32>
    %cst_22 = arith.constant dense<0xFF800000> : vector<8xf32>
    %31 = vector.multi_reduction <maximumf>, %30, %cst_22 [1] : vector<8x128xf32> to vector<8xf32>
    %32 = vector.shape_cast %31 : vector<8xf32> to vector<8x1xf32>
    %33 = vector.broadcast %32 : vector<8x1xf32> to vector<8x128xf32>
    %34 = arith.subf %30, %33 : vector<8x128xf32>
    %35 = math.exp %34 : vector<8x128xf32>
    %cst_23 = arith.constant dense<0.000000e+00> : vector<8xf32>
    %36 = vector.multi_reduction <add>, %35, %cst_23 [1] : vector<8x128xf32> to vector<8xf32>
    %37 = vector.shape_cast %36 : vector<8xf32> to vector<8x1xf32>
    %38 = tpu.reciprocal %37 {approx = true} : vector<8x1xf32> -> vector<8x1xf32>
    %39 = vector.broadcast %38 : vector<8x1xf32> to vector<8x128xf32>
    %40 = arith.mulf %35, %39 : vector<8x128xf32>
    %41 = tpu.iota {dimensions = array<i32: 1>} : vector<8x128xi32>
    %c4_i32 = arith.constant 4 : i32
    %42 = vector.broadcast %c4_i32 : i32 to vector<8x128xi32>
    %43 = arith.cmpi eq, %41, %42 : vector<8x128xi32>
    %44 = vector.shape_cast %16 : vector<8x1xf32> to vector<8x1xf32>
    %45 = vector.broadcast %44 : vector<8x1xf32> to vector<8x128xf32>
    %46 = arith.select %43, %45, %40 : vector<8x128xi1>, vector<8x128xf32>
    %c0_24 = arith.constant 0 : index
    %c0_25 = arith.constant 0 : index
    %47 = vector.load %arg10[%c0_24, %c0_25] : memref<8x128xf32, #tpu.memory_space<vmem>>, vector<8x128xf32>
    tpu.vector_store %arg10[%c0_24, %c0_25], %46 {strides = array<i32>} : memref<8x128xf32, #tpu.memory_space<vmem>>, vector<8x128xf32>,
    return
  }
  func.func @transform_0(%arg0: i32) -> (i32, i32) {
    %c0_i32 = arith.constant 0 : i32
    %c0_i32_0 = arith.constant 0 : i32
    return %arg0, %c0_i32 : i32, i32
  }
  func.func @transform_1(%arg0: i32) -> (i32, i32) {
    %c0_i32 = arith.constant 0 : i32
    %c0_i32_0 = arith.constant 0 : i32
    %c0_i32_1 = arith.constant 0 : i32
    return %c0_i32, %c0_i32_0 : i32, i32
  }
  func.func @transform_2(%arg0: i32) -> (i32, i32) {
    %c0_i32 = arith.constant 0 : i32
    %c0_i32_0 = arith.constant 0 : i32
    %c0_i32_1 = arith.constant 0 : i32
    return %c0_i32, %c0_i32_0 : i32, i32
  }
  func.func @transform_3(%arg0: i32) -> (i32, i32) {
    %c0_i32 = arith.constant 0 : i32
    %c0_i32_0 = arith.constant 0 : i32
    %c0_i32_1 = arith.constant 0 : i32
    return %c0_i32, %c0_i32_0 : i32, i32
  }
  func.func @transform_4(%arg0: i32) -> (i32, i32) {
    %c0_i32 = arith.constant 0 : i32
    %c0_i32_0 = arith.constant 0 : i32
    %c0_i32_1 = arith.constant 0 : i32
    return %c0_i32, %c0_i32_0 : i32, i32
  }
  func.func @transform_5(%arg0: i32) -> (i32, i32) {
    %c0_i32 = arith.constant 0 : i32
    %c0_i32_0 = arith.constant 0 : i32
    %c0_i32_1 = arith.constant 0 : i32
    return %c0_i32, %c0_i32_0 : i32, i32
  }
  func.func @transform_6(%arg0: i32) -> (i32, i32) {
    %c0_i32 = arith.constant 0 : i32
    %c0_i32_0 = arith.constant 0 : i32
    %c0_i32_1 = arith.constant 0 : i32
    return %c0_i32, %c0_i32_0 : i32, i32
  }
  func.func @transform_7(%arg0: i32) -> (i32, i32) {
    %c0_i32 = arith.constant 0 : i32
    %c0_i32_0 = arith.constant 0 : i32
    %c0_i32_1 = arith.constant 0 : i32
    return %c0_i32, %c0_i32_0 : i32, i32
  }
  func.func @transform_8(%arg0: i32) -> (i32, i32) {
    %c0_i32 = arith.constant 0 : i32
    %c0_i32_0 = arith.constant 0 : i32
    %c0_i32_1 = arith.constant 0 : i32
    return %c0_i32, %c0_i32_0 : i32, i32
  }
  func.func @transform_9(%arg0: i32) -> (i32, i32) {
    %c0_i32 = arith.constant 0 : i32
    %c0_i32_0 = arith.constant 0 : i32
    return %arg0, %c0_i32 : i32, i32
  }
}

</mosaic_0001>

<llo_original>
// kernel: tpu_custom_call.1
$region0: #{tpu_custom_call.1}
  #allocation0 [shape = 'u32[]', space=smem, size = 0x4, offset = 0x4, fixed_abs, tag = 'smem constant byte address 0x4 - core index']
  #allocation1 [shape = 'u32[144,128]{1,0:T(1,128)}', space=vmem, size = 0x12000, scoped, tag = 'internal scratch']
  #allocation2 [shape = 'f32[1,1]{1,0:T(1,128)S(1)}', space=vmem, size = 0x200, scoped, tag = 'scoped memory for tpu_custom_call.1']
  %s0 = inlined_call_operand.hbm [shape: f32[8,8], index: 0, kind: input, shape index: {}]
  %s1 = inlined_call_operand.hbm [shape: bf16[8,128], index: 1, kind: input, shape index: {}]
  %s2 = inlined_call_operand.vmem [shape: f32[1,128], index: 2, kind: input, shape index: {}]
  %s3 = inlined_call_operand.vmem [shape: f32[1,128], index: 3, kind: input, shape index: {}]
  %s4 = inlined_call_operand.<no memory space> [shape: f32[1,1], index: 4, kind: input, shape index: {}]
  %s5 = inlined_call_operand.hbm [shape: bf16[128,256], index: 5, kind: input, shape index: {}]
  %s6 = inlined_call_operand.vmem [shape: f32[1,256], index: 6, kind: input, shape index: {}]
  %s7 = inlined_call_operand.hbm [shape: bf16[256,128], index: 7, kind: input, shape index: {}]
  %s8 = inlined_call_operand.vmem [shape: f32[1,128], index: 8, kind: input, shape index: {}]
  %s9 = inlined_call_operand.hbm [shape: f32[8,128], index: 9, kind: output, shape index: {}]
  %s10 = sld [smem:[#allocation0]]
  $region62: #{tpu_custom_call.1} parent=0
    _
  %s12 = ssub.s32 1, %s10
  %s13 = scalar_select 0, %s12, %s10
  %v14 = vstv %s4
  %15 = vst [vmem:[#allocation2] sm:$0x1] %v14
  $region1: #{tpu_custom_call.1} parent=0
    #allocation3 [shape = 'u8[4096]{0}', space=vmem, size = 0x1000, scoped, tag = 'input window, operand 0, single buffered']
    #allocation4 [shape = 's32[1]{0}', space=sflag, size = 0x4, scoped, tag = 'scoped memory for tpu_custom_call.1']
    #allocation5 [shape = 's32[1]{0}', space=sflag, size = 0x4, scoped, tag = 'scoped memory for tpu_custom_call.1']
    #allocation6 [shape = 'u8[2048]{0}', space=vmem, size = 0x800, scoped, tag = 'input window, operand 1, single buffered']
    #allocation7 [shape = 's32[1]{0}', space=sflag, size = 0x4, scoped, tag = 'scoped memory for tpu_custom_call.1']
    #allocation8 [shape = 'u8[65536]{0}', space=vmem, size = 0x10000, scoped, tag = 'input window, operand 5, single buffered']
    #allocation9 [shape = 'u8[65536]{0}', space=vmem, size = 0x10000, scoped, tag = 'input window, operand 7, single buffered']
    #allocation10 [shape = 's32[1]{0}', space=sflag, size = 0x4, scoped, tag = 'scoped memory for tpu_custom_call.1']
    #allocation11 [shape = 'u8[4096]{0}', space=vmem, size = 0x1000, scoped, tag = 'output window, operand 0, single buffered']
    %16 = vsyncpa [#allocation4], 0
    %17 = vsyncpa [#allocation7], 0
    %18 = vsyncpa [#allocation10], 0
    %19 = vsyncpa [#allocation5], 0
    // Predicated region
    $region2: #{tpu_custom_call.1} parent=1 // pred_check
      _
    $region3: #{tpu_custom_call.1} parent=1 // pred_check_branch
      %21 = sbr.rel (0) target = $region5
    $region4: #{tpu_custom_call.1} parent=1 // pred_region
      %s23 = ssub.s32 128, 128
      %24 = vsyncadd [#allocation4], %s23
      %s26 = sshll.u32 [#allocation3], 4
      %s27 = int_to_ptr.vmem [resolvable:$true] %s26
      %29 = dma.hbm_to_vmem [thread:$0]  %s0, 128, %s27, [#allocation4]
    $region5: #{tpu_custom_call.1} parent=1 // pred_fallthru
      _
    // Predicated region
    $region6: #{tpu_custom_call.1} parent=1 // pred_check
      _
    $region7: #{tpu_custom_call.1} parent=1 // pred_check_branch
      %31 = sbr.rel (0) target = $region9
    $region8: #{tpu_custom_call.1} parent=1 // pred_region
      %s33 = ssub.s32 64, 64
      %34 = vsyncadd [#allocation7], %s33
      %s36 = sshll.u32 [#allocation6], 4
      %s37 = int_to_ptr.vmem [resolvable:$true] %s36
      %39 = dma.hbm_to_vmem [thread:$0]  %s1, 64, %s37, [#allocation7]
    $region9: #{tpu_custom_call.1} parent=1 // pred_fallthru
      _
    // Predicated region
    $region10: #{tpu_custom_call.1} parent=1 // pred_check
      _
    $region11: #{tpu_custom_call.1} parent=1 // pred_check_branch
      %41 = sbr.rel (0) target = $region13
    $region12: #{tpu_custom_call.1} parent=1 // pred_region
      _
    $region13: #{tpu_custom_call.1} parent=1 // pred_fallthru
      _
    // Predicated region
    $region14: #{tpu_custom_call.1} parent=1 // pred_check
      _
    $region15: #{tpu_custom_call.1} parent=1 // pred_check_branch
      %43 = sbr.rel (0) target = $region17
    $region16: #{tpu_custom_call.1} parent=1 // pred_region
      _
    $region17: #{tpu_custom_call.1} parent=1 // pred_fallthru
      _
    // Predicated region
    $region18: #{tpu_custom_call.1} parent=1 // pred_check
      _
    $region19: #{tpu_custom_call.1} parent=1 // pred_check_branch
      %45 = sbr.rel (0) target = $region21
    $region20: #{tpu_custom_call.1} parent=1 // pred_region
      _
    $region21: #{tpu_custom_call.1} parent=1 // pred_fallthru
      _
    // Predicated region
    $region22: #{tpu_custom_call.1} parent=1 // pred_check
      _
    $region23: #{tpu_custom_call.1} parent=1 // pred_check_branch
      %47 = sbr.rel (0) target = $region25
    $region24: #{tpu_custom_call.1} parent=1 // pred_region
      %s49 = ssub.s32 2048, 2048
      %50 = vsyncadd [#allocation7], %s49
      %s51 = sshll.u32 [#allocation8], 4
      %s52 = int_to_ptr.vmem [resolvable:$true] %s51
      %57 = dma.hbm_to_vmem [thread:$0]  %s5, 2048, %s52, [#allocation7], 128, 128, 8
    $region25: #{tpu_custom_call.1} parent=1 // pred_fallthru
      _
    // Predicated region
    $region26: #{tpu_custom_call.1} parent=1 // pred_check
      _
    $region27: #{tpu_custom_call.1} parent=1 // pred_check_branch
      %59 = sbr.rel (0) target = $region29
    $region28: #{tpu_custom_call.1} parent=1 // pred_region
      _
    $region29: #{tpu_custom_call.1} parent=1 // pred_fallthru
      _
    // Predicated region
    $region30: #{tpu_custom_call.1} parent=1 // pred_check
      _
    $region31: #{tpu_custom_call.1} parent=1 // pred_check_branch
      %61 = sbr.rel (0) target = $region33
    $region32: #{tpu_custom_call.1} parent=1 // pred_region
      %s63 = ssub.s32 2048, 2048
      %64 = vsyncadd [#allocation10], %s63
      %s65 = sshll.u32 [#allocation9], 4
      %s66 = int_to_ptr.vmem [resolvable:$true] %s65
      %71 = dma.hbm_to_vmem [thread:$0]  %s7, 2048, %s66, [#allocation10], 64, 64, 4
    $region33: #{tpu_custom_call.1} parent=1 // pred_fallthru
      _
    // Predicated region
    $region34: #{tpu_custom_call.1} parent=1 // pred_check
      _
    $region35: #{tpu_custom_call.1} parent=1 // pred_check_branch
      %73 = sbr.rel (0) target = $region37
    $region36: #{tpu_custom_call.1} parent=1 // pred_region
      _
    $region37: #{tpu_custom_call.1} parent=1 // pred_fallthru
      _
    // Predicated region
    $region38: #{tpu_custom_call.1} parent=1 // pred_check
      _
    $region39: #{tpu_custom_call.1} parent=1 // pred_check_branch
      %75 = sbr.rel (0) target = $region41
    $region40: #{tpu_custom_call.1} parent=1 // pred_region
      %76 = dma.done [#allocation4], 128
    $region41: #{tpu_custom_call.1} parent=1 // pred_fallthru
      _
    // Predicated region
    $region42: #{tpu_custom_call.1} parent=1 // pred_check
      _
    $region43: #{tpu_custom_call.1} parent=1 // pred_check_branch
      %78 = sbr.rel (0) target = $region45
    $region44: #{tpu_custom_call.1} parent=1 // pred_region
      %79 = dma.done [#allocation7], 64
    $region45: #{tpu_custom_call.1} parent=1 // pred_fallthru
      _
    // Predicated region
    $region46: #{tpu_custom_call.1} parent=1 // pred_check
      _
    $region47: #{tpu_custom_call.1} parent=1 // pred_check_branch
      %81 = sbr.rel (0) target = $region49
    $region48: #{tpu_custom_call.1} parent=1 // pred_region
      %82 = dma.done [#allocation7], 2048
    $region49: #{tpu_custom_call.1} parent=1 // pred_fallthru
      _
    // Predicated region
    $region50: #{tpu_custom_call.1} parent=1 // pred_check
      _
    $region51: #{tpu_custom_call.1} parent=1 // pred_check_branch
      %84 = sbr.rel (0) target = $region53
    $region52: #{tpu_custom_call.1} parent=1 // pred_region
      %85 = dma.done [#allocation10], 2048
    $region53: #{tpu_custom_call.1} parent=1 // pred_fallthru
      _
    %v87 = vld [vmem:[#allocation3] sm:$0xff]
    %v88 = vpack.c.bf16 %v87, %v87
    %v89 = vld [vmem:[#allocation6] sm:$0xf]
    %v90 = vld [vmem:[%s2] sm:$0x1]
    %v92 = vlaneseq
    %v93 = vshrl.u32 %v92, 7
    %v94 = vsub.s32 0, %v93
    %v95 = vrot.slane %v90, %v94
    %vm97 = vcmask 64512
    %v99 = vsel %vm97, %v88, 0
    %vm101 = vcmask 1043456
    %v103 = vsel %vm101, %v89, 0
    %105 = vmatprep.subr.bf16.mxu0 0
    %106 = vmatpush1.bf16.msra.mxu0 0
    %107 = vmatprep.subr.bf16.mxu0 0
    %108 = vmatpush1.bf16.msra.mxu0 0
    %109 = vmatprep.subr.bf16.mxu0 0
    %110 = vmatpush1.bf16.msra.mxu0 0
    %111 = vmatprep.subr.bf16.mxu0 0
    %112 = vmatpush1.bf16.msra.mxu0 0
    %113 = vmatprep.subr.bf16.mxu0 0
    %114 = vmatpush1.bf16.msra.mxu0 0
    %115 = vmatprep.subr.bf16.mxu0 0
    %116 = vmatpush1.bf16.msra.mxu0 0
    %117 = vmatprep.subr.bf16.mxu0 0
    %118 = vmatpush1.bf16.msra.mxu0 0
    %119 = vmatprep.subr.bf16.mxu0 0
    %120 = vmatpush1.bf16.msra.mxu0 %v103
    %121 = vmatprep.subr.bf16.mxu0 0
    %122 = vmatpush2.bf16.msra.mxu0 0
    %123 = vmatprep.subr.bf16.mxu0 0
    %124 = vmatpush2.bf16.msra.mxu0 0
    %125 = vmatprep.subr.bf16.mxu0 0
    %126 = vmatpush2.bf16.msra.mxu0 0
    %127 = vmatprep.subr.bf16.mxu0 0
    %128 = vmatpush2.bf16.msra.mxu0 0
    %129 = vmatprep.subr.bf16.mxu0 0
    %130 = vmatpush2.bf16.msra.mxu0 0
    %131 = vmatprep.subr.bf16.mxu0 0
    %132 = vmatpush2.bf16.msra.mxu0 0
    %133 = vmatprep.subr.bf16.mxu0 0
    %134 = vmatpush2.bf16.msra.mxu0 0
    %135 = vmatprep.subr.bf16.mxu0 0
    %136 = vmatpush2.bf16.msra.mxu0 0
    %137 = vmatprep.mubr.bf16.mxu0 0
    %138 = vmatmul.mubr.bf16.gmra.mxu0 %v99
    %v139 = vpop.f32.mrf.mxu0
    %v140 = vadd.f32 %v95, %v139
    %v141 = vpop.f32.mrf.mxu0
    %v142 = vpop.f32.mrf.mxu0
    %v143 = vpop.f32.mrf.mxu0
    %144 = vdwg.mxu0
    %v145 = vmax.f32 %v140, 0.0
    %v146 = vld [vmem:[%s3] sm:$0x1]
    %v148 = vlaneseq
    %v149 = vshrl.u32 %v148, 7
    %v150 = vsub.s32 0, %v149
    %v151 = vrot.slane %v146, %v150
    %v153 = vmul.f32 %v145, %v151
    %154 = vadd.xlane.f32.xlu0 %v153
    %v155 = vpop.xlane.xlu0 %154
    %v156 = vld [vmem:[#allocation2] sm:$0x1]
    %v158 = vlaneseq
    %v159 = vshrl.u32 %v158, 7
    %v160 = vsub.s32 0, %v159
    %v161 = vrot.slane %v156, %v160
    %v163 = vadd.f32 %v155, %v161
    %v164 = vpack.c.bf16 %v145, %v145
    %v165 = vld [vmem:[#allocation8] sm:$0xff]
    %v166 = vld [vmem:[#allocation8 + $0x8] sm:$0xff]
    %v167 = vld [vmem:[#allocation8 + $0x10] sm:$0xff]
    %v168 = vld [vmem:[#allocation8 + $0x18] sm:$0xff]
    %v169 = vld [vmem:[#allocation8 + $0x20] sm:$0xff]
    %v170 = vld [vmem:[#allocation8 + $0x28] sm:$0xff]
    %v171 = vld [vmem:[#allocation8 + $0x30] sm:$0xff]
    %v172 = vld [vmem:[#allocation8 + $0x38] sm:$0xff]
    %v173 = vld [vmem:[#allocation8 + $0x40] sm:$0xff]
    %v174 = vld [vmem:[#allocation8 + $0x48] sm:$0xff]
    %v175 = vld [vmem:[#allocation8 + $0x50] sm:$0xff]
    %v176 = vld [vmem:[#allocation8 + $0x58] sm:$0xff]
    %v177 = vld [vmem:[#allocation8 + $0x60] sm:$0xff]
    %v178 = vld [vmem:[#allocation8 + $0x68] sm:$0xff]
    %v179 = vld [vmem:[#allocation8 + $0x70] sm:$0xff]
    %v180 = vld [vmem:[#allocation8 + $0x78] sm:$0xff]
    %v181 = vld [vmem:[%s6] sm:$0x3]
    %v183 = vlaneseq
    %v184 = vshrl.u32 %v183, 7
    %v185 = vsub.s32 0, %v184
    %v186 = vrot.slane %v181, %v185
    %v187 = vlaneseq
    %v188 = vshrl.u32 %v187, 7
    %v189 = vsub.s32 1, %v188
    %v190 = vrot.slane %v181, %v189
    %v209 = vunpack.c.l.b16 %v165
    %v210 = vunpack.c.h.b16 %v165
    %v211 = vunpack.c.l.b16 %v166
    %v212 = vunpack.c.h.b16 %v166
    %v213 = vunpack.c.l.b16 %v167
    %v214 = vunpack.c.h.b16 %v167
    %v215 = vunpack.c.l.b16 %v168
    %v216 = vunpack.c.h.b16 %v168
    %v217 = vunpack.c.l.b16 %v169
    %v218 = vunpack.c.h.b16 %v169
    %v219 = vunpack.c.l.b16 %v170
    %v220 = vunpack.c.h.b16 %v170
    %v221 = vunpack.c.l.b16 %v171
    %v222 = vunpack.c.h.b16 %v171
    %v223 = vunpack.c.l.b16 %v172
    %v224 = vunpack.c.h.b16 %v172
    %v225 = vunpack.c.l.b16 %v173
    %v226 = vunpack.c.h.b16 %v173
    %v227 = vunpack.c.l.b16 %v174
    %v228 = vunpack.c.h.b16 %v174
    %v229 = vunpack.c.l.b16 %v175
    %v230 = vunpack.c.h.b16 %v175
    %v231 = vunpack.c.l.b16 %v176
    %v232 = vunpack.c.h.b16 %v176
    %v233 = vunpack.c.l.b16 %v177
    %v234 = vunpack.c.h.b16 %v177
    %v235 = vunpack.c.l.b16 %v178
    %v236 = vunpack.c.h.b16 %v178
    %v237 = vunpack.c.l.b16 %v179
    %v238 = vunpack.c.h.b16 %v179
    %v239 = vunpack.c.l.b16 %v180
    %v240 = vunpack.c.h.b16 %v180
    %v241 = vpack.c.b16 %v211, %v209
    %v242 = vpack.c.b16 %v212, %v210
    %v243 = vpack.c.b16 %v215, %v213
    %v244 = vpack.c.b16 %v216, %v214
    %v245 = vpack.c.b16 %v219, %v217
    %v246 = vpack.c.b16 %v220, %v218
    %v247 = vpack.c.b16 %v223, %v221
    %v248 = vpack.c.b16 %v224, %v222
    %v249 = vpack.c.b16 %v227, %v225
    %v250 = vpack.c.b16 %v228, %v226
    %v251 = vpack.c.b16 %v231, %v229
    %v252 = vpack.c.b16 %v232, %v230
    %v253 = vpack.c.b16 %v235, %v233
    %v254 = vpack.c.b16 %v236, %v234
    %v255 = vpack.c.b16 %v239, %v237
    %v256 = vpack.c.b16 %v240, %v238
    %273 = vmatprep.subr.bf16.mxu0 %v256
    %274 = vmatpush1.bf16.msra.mxu0 %v255
    %275 = vmatprep.subr.bf16.mxu0 %v254
    %276 = vmatpush1.bf16.msra.mxu0 %v253
    %277 = vmatprep.subr.bf16.mxu0 %v252
    %278 = vmatpush1.bf16.msra.mxu0 %v251
    %279 = vmatprep.subr.bf16.mxu0 %v250
    %280 = vmatpush1.bf16.msra.mxu0 %v249
    %281 = vmatprep.subr.bf16.mxu0 %v248
    %282 = vmatpush1.bf16.msra.mxu0 %v247
    %283 = vmatprep.subr.bf16.mxu0 %v246
    %284 = vmatpush1.bf16.msra.mxu0 %v245
    %285 = vmatprep.subr.bf16.mxu0 %v244
    %286 = vmatpush1.bf16.msra.mxu0 %v243
    %287 = vmatprep.subr.bf16.mxu0 %v242
    %288 = vmatpush1.bf16.msra.mxu0 %v241
    %289 = vmatprep.subr.bf16.mxu0 0
    %290 = vmatpush2.bf16.msra.mxu0 0
    %291 = vmatprep.subr.bf16.mxu0 0
    %292 = vmatpush2.bf16.msra.mxu0 0
    %293 = vmatprep.subr.bf16.mxu0 0
    %294 = vmatpush2.bf16.msra.mxu0 0
    %295 = vmatprep.subr.bf16.mxu0 0
    %296 = vmatpush2.bf16.msra.mxu0 0
    %297 = vmatprep.subr.bf16.mxu0 0
    %298 = vmatpush2.bf16.msra.mxu0 0
    %299 = vmatprep.subr.bf16.mxu0 0
    %300 = vmatpush2.bf16.msra.mxu0 0
    %301 = vmatprep.subr.bf16.mxu0 0
    %302 = vmatpush2.bf16.msra.mxu0 0
    %303 = vmatprep.subr.bf16.mxu0 0
    %304 = vmatpush2.bf16.msra.mxu0 0
    %305 = vmatprep.mubr.bf16.mxu0 0
    %306 = vmatmul.mubr.bf16.gmra.mxu0 %v164
    %v307 = vpop.f32.mrf.mxu0
    %v308 = vadd.f32 %v186, %v307
    %v309 = vpop.f32.mrf.mxu0
    %v310 = vadd.f32 %v190, %v309
    %v311 = vpop.f32.mrf.mxu0
    %v312 = vpop.f32.mrf.mxu0
    %313 = vdwg.mxu0
    %v314 = vmax.f32 %v308, 0.0
    %v315 = vmax.f32 %v310, 0.0
    %v316 = vpack.c.bf16 %v314, %v314
    %v317 = vpack.c.bf16 %v315, %v315
    %v318 = vld [vmem:[#allocation9] sm:$0xf]
    %v319 = vld [vmem:[#allocation9 + $0x4] sm:$0xf]
    %v320 = vld [vmem:[#allocation9 + $0x8] sm:$0xf]
    %v321 = vld [vmem:[#allocation9 + $0xc] sm:$0xf]
    %v322 = vld [vmem:[#allocation9 + $0x10] sm:$0xf]
    %v323 = vld [vmem:[#allocation9 + $0x14] sm:$0xf]
    %v324 = vld [vmem:[#allocation9 + $0x18] sm:$0xf]
    %v325 = vld [vmem:[#allocation9 + $0x1c] sm:$0xf]
    %v326 = vld [vmem:[#allocation9 + $0x20] sm:$0xf]
    %v327 = vld [vmem:[#allocation9 + $0x24] sm:$0xf]
    %v328 = vld [vmem:[#allocation9 + $0x28] sm:$0xf]
    %v329 = vld [vmem:[#allocation9 + $0x2c] sm:$0xf]
    %v330 = vld [vmem:[#allocation9 + $0x30] sm:$0xf]
    %v331 = vld [vmem:[#allocation9 + $0x34] sm:$0xf]
    %v332 = vld [vmem:[#allocation9 + $0x38] sm:$0xf]
    %v333 = vld [vmem:[#allocation9 + $0x3c] sm:$0xf]
    %v334 = vld [vmem:[#allocation9 + $0x40] sm:$0xf]
    %v335 = vld [vmem:[#allocation9 + $0x44] sm:$0xf]
    %v336 = vld [vmem:[#allocation9 + $0x48] sm:$0xf]
    %v337 = vld [vmem:[#allocation9 + $0x4c] sm:$0xf]
    %v338 = vld [vmem:[#allocation9 + $0x50] sm:$0xf]
    %v339 = vld [vmem:[#allocation9 + $0x54] sm:$0xf]
    %v340 = vld [vmem:[#allocation9 + $0x58] sm:$0xf]
    %v341 = vld [vmem:[#allocation9 + $0x5c] sm:$0xf]
    %v342 = vld [vmem:[#allocation9 + $0x60] sm:$0xf]
    %v343 = vld [vmem:[#allocation9 + $0x64] sm:$0xf]
    %v344 = vld [vmem:[#allocation9 + $0x68] sm:$0xf]
    %v345 = vld [vmem:[#allocation9 + $0x6c] sm:$0xf]
    %v346 = vld [vmem:[#allocation9 + $0x70] sm:$0xf]
    %v347 = vld [vmem:[#allocation9 + $0x74] sm:$0xf]
    %v348 = vld [vmem:[#allocation9 + $0x78] sm:$0xf]
    %v349 = vld [vmem:[#allocation9 + $0x7c] sm:$0xf]
    %v350 = vld [vmem:[%s8] sm:$0x1]
    %v352 = vlaneseq
    %v353 = vshrl.u32 %v352, 7
    %v354 = vsub.s32 0, %v353
    %v355 = vrot.slane %v350, %v354
    %v389 = vunpack.c.l.b16 %v318
    %v390 = vunpack.c.l.b16 %v319
    %v391 = vunpack.c.l.b16 %v320
    %v392 = vunpack.c.l.b16 %v321
    %v393 = vunpack.c.l.b16 %v322
    %v394 = vunpack.c.l.b16 %v323
    %v395 = vunpack.c.l.b16 %v324
    %v396 = vunpack.c.l.b16 %v325
    %v397 = vunpack.c.l.b16 %v326
    %v398 = vunpack.c.l.b16 %v327
    %v399 = vunpack.c.l.b16 %v328
    %v400 = vunpack.c.l.b16 %v329
    %v401 = vunpack.c.l.b16 %v330
    %v402 = vunpack.c.l.b16 %v331
    %v403 = vunpack.c.l.b16 %v332
    %v404 = vunpack.c.l.b16 %v333
    %v405 = vunpack.c.l.b16 %v334
    %v406 = vunpack.c.l.b16 %v335
    %v407 = vunpack.c.l.b16 %v336
    %v408 = vunpack.c.l.b16 %v337
    %v409 = vunpack.c.l.b16 %v338
    %v410 = vunpack.c.l.b16 %v339
    %v411 = vunpack.c.l.b16 %v340
    %v412 = vunpack.c.l.b16 %v341
    %v413 = vunpack.c.l.b16 %v342
    %v414 = vunpack.c.l.b16 %v343
    %v415 = vunpack.c.l.b16 %v344
    %v416 = vunpack.c.l.b16 %v345
    %v417 = vunpack.c.l.b16 %v346
    %v418 = vunpack.c.l.b16 %v347
    %v419 = vunpack.c.l.b16 %v348
    %v420 = vunpack.c.l.b16 %v349
    %v421 = vpack.c.b16 %v390, %v389
    %v422 = vpack.c.b16 %v392, %v391
    %v423 = vpack.c.b16 %v394, %v393
    %v424 = vpack.c.b16 %v396, %v395
    %v425 = vpack.c.b16 %v398, %v397
    %v426 = vpack.c.b16 %v400, %v399
    %v427 = vpack.c.b16 %v402, %v401
    %v428 = vpack.c.b16 %v404, %v403
    %v429 = vpack.c.b16 %v406, %v405
    %v430 = vpack.c.b16 %v408, %v407
    %v431 = vpack.c.b16 %v410, %v409
    %v432 = vpack.c.b16 %v412, %v411
    %v433 = vpack.c.b16 %v414, %v413
    %v434 = vpack.c.b16 %v416, %v415
    %v435 = vpack.c.b16 %v418, %v417
    %v436 = vpack.c.b16 %v420, %v419
    %453 = vmatprep.subr.bf16.mxu0 0
    %454 = vmatpush1.bf16.msra.mxu0 %v428
    %455 = vmatprep.subr.bf16.mxu0 0
    %456 = vmatpush1.bf16.msra.mxu0 %v427
    %457 = vmatprep.subr.bf16.mxu0 0
    %458 = vmatpush1.bf16.msra.mxu0 %v426
    %459 = vmatprep.subr.bf16.mxu0 0
    %460 = vmatpush1.bf16.msra.mxu0 %v425
    %461 = vmatprep.subr.bf16.mxu0 0
    %462 = vmatpush1.bf16.msra.mxu0 %v424
    %463 = vmatprep.subr.bf16.mxu0 0
    %464 = vmatpush1.bf16.msra.mxu0 %v423
    %465 = vmatprep.subr.bf16.mxu0 0
    %466 = vmatpush1.bf16.msra.mxu0 %v422
    %467 = vmatprep.subr.bf16.mxu0 0
    %468 = vmatpush1.bf16.msra.mxu0 %v421
    %469 = vmatprep.subr.bf16.mxu0 0
    %470 = vmatpush2.bf16.msra.mxu0 %v436
    %471 = vmatprep.subr.bf16.mxu0 0
    %472 = vmatpush2.bf16.msra.mxu0 %v435
    %473 = vmatprep.subr.bf16.mxu0 0
    %474 = vmatpush2.bf16.msra.mxu0 %v434
    %475 = vmatprep.subr.bf16.mxu0 0
    %476 = vmatpush2.bf16.msra.mxu0 %v433
    %477 = vmatprep.subr.bf16.mxu0 0
    %478 = vmatpush2.bf16.msra.mxu0 %v432
    %479 = vmatprep.subr.bf16.mxu0 0
    %480 = vmatpush2.bf16.msra.mxu0 %v431
    %481 = vmatprep.subr.bf16.mxu0 0
    %482 = vmatpush2.bf16.msra.mxu0 %v430
    %483 = vmatprep.subr.bf16.mxu0 0
    %484 = vmatpush2.bf16.msra.mxu0 %v429
    %485 = vmatprep.mubr.bf16.mxu0 %v317
    %486 = vmatmul.mubr.bf16.gmra.mxu0 %v316
    %v487 = vpop.f32.mrf.mxu0
    %v488 = vadd.f32 %v355, %v487
    %v489 = vpop.f32.mrf.mxu0
    %v490 = vpop.f32.mrf.mxu0
    %v491 = vpop.f32.mrf.mxu0
    %492 = vdwg.mxu0
    %493 = vmax.xlane.f32.xlu0 %v488
    %v494 = vpop.xlane.xlu0 %493
    %v495 = vsub.f32 %v488, %v494
    %v496 = vmul.f32 %v495, 1.442695
    %v497 = vpow.pop %v496
    %498 = vadd.xlane.f32.xlu0 %v497
    %v499 = vpop.xlane.xlu0 %498
    %v500 = vrcp.pop %v499
    %v501 = vmul.f32 %v497, %v500
    %v502 = vlaneseq
    %v503 = vand.u32 %v502, 127
    %vm504 = vcmp.eq.s32.totalorder %v503, 4
    %506 = vset.pattern.permute.xlu0 0
    %507 = vperm.xlu0 %506, %v163
    %v508 = vpop.permute.xlu0 %507
    %v510 = vsel %vm504, %v508, %v501
    %511 = vst [vmem:[#allocation11] sm:$0xff] %v510
    // Predicated region
    $region54: #{tpu_custom_call.1} parent=1 // pred_check
      _
    $region55: #{tpu_custom_call.1} parent=1 // pred_check_branch
      %513 = sbr.rel (0) target = $region57
    $region56: #{tpu_custom_call.1} parent=1 // pred_region
      %s515 = ssub.s32 128, 128
      %516 = vsyncadd [#allocation5], %s515
      %s518 = sshll.u32 [#allocation11], 4
      %s519 = int_to_ptr.vmem [resolvable:$true] %s518
      %521 = dma.vmem_to_hbm [thread:$0]  %s519, 128, %s9, [#allocation5]
    $region57: #{tpu_custom_call.1} parent=1 // pred_fallthru
      _
    // Predicated region
    $region58: #{tpu_custom_call.1} parent=1 // pred_check
      _
    $region59: #{tpu_custom_call.1} parent=1 // pred_check_branch
      %523 = sbr.rel (0) target = $region61
    $region60: #{tpu_custom_call.1} parent=1 // pred_region
      %524 = dma.done [#allocation5], 128
    $region61: #{tpu_custom_call.1} parent=1 // pred_fallthru
      _
    %525 = vsyncpa [#allocation4], 1
    %526 = vsyncpa [#allocation7], 1
    %527 = vsyncpa [#allocation10], 1
    %528 = vsyncpa [#allocation5], 1

</llo_original>
